<compile_context>
chip_gen: v7x
topology: tpu7x:2x2x1
jax: 0.10.0
libtpu: 0.0.40
codegen_flags: <defaults>
</compile_context>

<pallas_src>
import functools

import jax
import jax.numpy as jnp
from jax import lax
from jax.experimental import pallas as pl
from jax.experimental.pallas import tpu as pltpu


def _ffn_kernel_fused(x_ref, w1_ref, b1_ref, w2_ref, b2_ref, out_ref):
    # x_ref: (TM, D_in) bf16; w1_ref: (D_in, H) bf16; b1_ref: (1, H) f32;
    # w2_ref: (H, D_out) bf16; b2_ref: (1, D_out) f32; out_ref: (TM, D_out).
    h = jnp.dot(x_ref[...], w1_ref[...], preferred_element_type=jnp.float32)
    h = jnp.maximum(h + b1_ref[...], 0.0)                       # relu #1 (f32)
    y = jnp.dot(h.astype(w2_ref.dtype), w2_ref[...],
                preferred_element_type=jnp.float32)
    out_ref[...] = jnp.maximum(y + b2_ref[...], 0.0).astype(out_ref.dtype)


def _ffn_kernel_hchunked(x_ref, w1_ref, b1_ref, w2_ref, b2_ref, out_ref,
                         acc_ref, *, h_chunk, n_chunks):
    # Large-H path: never materialize the full (TM, H) hidden activation; keep
    # only a (TM, h_chunk) slice live and accumulate into an f32 VMEM scratch.
    x = x_ref[...]
    acc_ref[...] = jnp.zeros_like(acc_ref)

    def body(k, carry):
        off = pl.multiple_of(k * h_chunk, h_chunk)
        hc = jnp.dot(x, w1_ref[:, pl.ds(off, h_chunk)],
                     preferred_element_type=jnp.float32)
        hc = jnp.maximum(hc + b1_ref[:, pl.ds(off, h_chunk)], 0.0)
        acc_ref[...] += jnp.dot(hc.astype(w2_ref.dtype),
                                w2_ref[pl.ds(off, h_chunk), :],
                                preferred_element_type=jnp.float32)
        return carry

    lax.fori_loop(0, n_chunks, body, 0, unroll=(n_chunks <= 8))
    out_ref[...] = jnp.maximum(acc_ref[...] + b2_ref[...], 0.0).astype(out_ref.dtype)


def ffn(x, w1, b1, w2, b2, *, block_m=512, compute_dtype=jnp.bfloat16,
        out_dtype=None, h_chunk=2048):
    """x: (M, D_in); w1: (D_in, H); b1: (H,); w2: (H, D_out); b2: (D_out,)."""
    m, d_in = x.shape
    h_dim = w1.shape[1]
    d_out = w2.shape[1]
    out_dtype = x.dtype if out_dtype is None else out_dtype

    # Pre-cast loop-invariant operands (and x) to the MXU feed dtype once in the
    # wrapper: halves weight HBM->VMEM traffic / residency and removes the
    # per-grid-step in-kernel cast.  Biases stay f32 (added to the f32 acc).
    x = x.astype(compute_dtype)
    w1 = w1.astype(compute_dtype)
    w2 = w2.astype(compute_dtype)
    b1 = b1.astype(jnp.float32).reshape(1, h_dim)
    b2 = b2.astype(jnp.float32).reshape(1, d_out)

    # Batch tile: as large as M / block_m allow, rounded to full MXU row blocks.
    tm = max(8, min(block_m, m))
    if tm >= 256:
        tm = (tm // 256) * 256
    elif tm >= 128:
        tm = (tm // 128) * 128
    else:
        tm = ((tm + 7) // 8) * 8
    m_pad = pl.cdiv(m, tm) * tm
    if m_pad != m:
        x = jnp.pad(x, ((0, m_pad - m), (0, 0)))
    grid = (m_pad // tm,)

    # Large-H: chunk the hidden dim so the (TM, H) intermediate never lives whole.
    chunked = (h_dim > h_chunk) and (h_dim % h_chunk == 0)
    if chunked:
        n_chunks = h_dim // h_chunk
        kernel = functools.partial(_ffn_kernel_hchunked,
                                   h_chunk=h_chunk, n_chunks=n_chunks)
        scratch_shapes = [pltpu.VMEM((tm, d_out), jnp.float32)]
    else:
        kernel = _ffn_kernel_fused
        scratch_shapes = []

    # Generation-aware VMEM budget (v5e/v6e: 128 MiB, v7x: 64 MiB per TC).
    w_bytes = jnp.dtype(compute_dtype).itemsize
    o_bytes = jnp.dtype(out_dtype).itemsize
    resident = w_bytes * (d_in * h_dim + h_dim * d_out) + 4 * (h_dim + d_out)
    tiles = 2 * tm * d_in * w_bytes + 2 * tm * d_out * o_bytes
    live_h = tm * min(h_chunk, h_dim) * 4 + (tm * d_out * 4 if chunked else 0)
    est = resident + tiles + live_h
    try:
        vmem_cap = pltpu.get_tpu_info().vmem_capacity_bytes
    except Exception:
        vmem_cap = 64 * 2**20
    cap = 96 * 2**20 if vmem_cap >= 100 * 2**20 else 44 * 2**20
    vmem_limit = int(min(cap, max(int(1.5 * est), 16 * 2**20)))

    cost = pl.CostEstimate(
        flops=2 * m_pad * d_in * h_dim + 2 * m_pad * h_dim * d_out,
        transcendentals=0,
        bytes_accessed=(m_pad * d_in * w_bytes
                        + w_bytes * (d_in * h_dim + h_dim * d_out)
                        + 4 * (h_dim + d_out)
                        + m_pad * d_out * o_bytes),
    )

    out = pl.pallas_call(
        kernel,
        out_shape=jax.ShapeDtypeStruct((m_pad, d_out), out_dtype),
        grid=grid,
        in_specs=[
            # x tile: software-pipelined over the batch grid.
            pl.BlockSpec((tm, d_in), lambda i: (i, 0)),
            # Resident weights/biases: constant index_map + single buffer.
            pl.BlockSpec((d_in, h_dim), lambda i: (0, 0),
                         pipeline_mode=pl.Buffered(1)),
            pl.BlockSpec((1, h_dim), lambda i: (0, 0),
                         pipeline_mode=pl.Buffered(1)),
            pl.BlockSpec((h_dim, d_out), lambda i: (0, 0),
                         pipeline_mode=pl.Buffered(1)),
            pl.BlockSpec((1, d_out), lambda i: (0, 0),
                         pipeline_mode=pl.Buffered(1)),
        ],
        out_specs=pl.BlockSpec((tm, d_out), lambda i: (i, 0)),
        scratch_shapes=scratch_shapes,
        compiler_params=pltpu.CompilerParams(
            dimension_semantics=("parallel",),
            vmem_limit_bytes=vmem_limit,
        ),
        cost_estimate=cost,
    )(x, w1, b1, w2, b2)
    return out[:m]


def init_params(key, d_in, hid, d_out):
    """Matches nn.Linear init: xavier_uniform weights, U(-1/sqrt(fan_in), ..) bias.
    Weights stored pre-transposed as (D_in, D_out) so the kernel does x @ W."""
    k1, k2, k3, k4 = jax.random.split(key, 4)
    xb1 = (6.0 / (d_in + hid)) ** 0.5
    xb2 = (6.0 / (hid + d_out)) ** 0.5
    bb1 = 1.0 / (d_in ** 0.5)
    bb2 = 1.0 / (hid ** 0.5)
    w1 = jax.random.uniform(k1, (d_in, hid), jnp.float32, -xb1, xb1)
    w2 = jax.random.uniform(k2, (hid, d_out), jnp.float32, -xb2, xb2)
    b1 = jax.random.uniform(k3, (hid,), jnp.float32, -bb1, bb1)
    b2 = jax.random.uniform(k4, (d_out,), jnp.float32, -bb2, bb2)
    return w1, b1, w2, b2


def reference(x, w1, b1, w2, b2, compute_dtype=jnp.float32):
    """Pure-JAX reference with operands rounded to the kernel's feed dtype."""
    f32 = jnp.float32
    xr = x.astype(compute_dtype).astype(f32)
    w1r = w1.astype(compute_dtype).astype(f32)
    w2r = w2.astype(compute_dtype).astype(f32)
    h = jnp.maximum(xr @ w1r + b1.astype(f32), 0.0)
    h = h.astype(compute_dtype).astype(f32)
    return jnp.maximum(h @ w2r + b2.astype(f32), 0.0)


if __name__ == "__main__":
    # Small, lane-dense shapes (last dims multiples of 128).
    B, D_IN, HID, D_OUT = 512, 128, 256, 128
    key = jax.random.PRNGKey(0)
    k_x, k_p = jax.random.split(key)
    x = jax.random.normal(k_x, (B, D_IN), jnp.float32)
    w1, b1, w2, b2 = init_params(k_p, D_IN, HID, D_OUT)

    # block_m=256 -> 2 pipelined batch tiles of 256 rows each (full MXU rows).
    out = ffn(x, w1, b1, w2, b2, block_m=256)
    out = jax.block_until_ready(out)

    ref = reference(x, w1, b1, w2, b2, compute_dtype=jnp.bfloat16)
    assert out.shape == (B, D_OUT)
    # bf16-operand kernel vs bf16-rounded-operand f32 reference: only
    # accumulation-order differences remain, so a modest tolerance suffices.
    assert jnp.allclose(out, ref, atol=1e-2, rtol=1e-2), "mismatch vs reference"

    print("KERNEL_OK")
</pallas_src>

<mosaic_0001>
module attributes {stable_mosaic.version = 11 : i64} {
  func.func @_ffn_kernel_fused(%arg0: i32, %arg1: memref<256x128xbf16, #tpu.memory_space<vmem>>, %arg2: memref<128x256xbf16, #tpu.memory_space<vmem>>, %arg3: memref<1x256xf32, #tpu.memory_space<vmem>>, %arg4: memref<256x128xbf16, #tpu.memory_space<vmem>>, %arg5: memref<1x128xf32, #tpu.memory_space<vmem>>, %arg6: memref<256x128xf32, #tpu.memory_space<vmem>>) attributes {dimension_semantics = [#tpu.dimension_semantics<parallel>], iteration_bounds = array<i64: 2>, scalar_prefetch = 0 : i64, scratch_operands = 0 : i64, tpu.core_type = #tpu.core_type<tc>, window_params = [{transform_indices = @transform_0, window_bounds = array<i64: 256, 128>}, {pipeline_mode = #tpu.pipeline_mode<synchronous>, transform_indices = @transform_1, window_bounds = array<i64: 128, 256>}, {pipeline_mode = #tpu.pipeline_mode<synchronous>, transform_indices = @transform_2, window_bounds = array<i64: 1, 256>}, {pipeline_mode = #tpu.pipeline_mode<synchronous>, transform_indices = @transform_3, window_bounds = array<i64: 256, 128>}, {pipeline_mode = #tpu.pipeline_mode<synchronous>, transform_indices = @transform_4, window_bounds = array<i64: 1, 128>}, {transform_indices = @transform_5, window_bounds = array<i64: 256, 128>}]} {
    %c0 = arith.constant 0 : index
    %c0_0 = arith.constant 0 : index
    %0 = vector.load %arg1[%c0, %c0_0] : memref<256x128xbf16, #tpu.memory_space<vmem>>, vector<256x128xbf16>
    %c0_1 = arith.constant 0 : index
    %c0_2 = arith.constant 0 : index
    %1 = vector.load %arg2[%c0_1, %c0_2] : memref<128x256xbf16, #tpu.memory_space<vmem>>, vector<128x256xbf16>
    %cst = arith.constant dense<0.000000e+00> : vector<256x256xf32>
    %2 = tpu.matmul %0, %1, %cst {dimension_numbers = #tpu.dot_dimension_numbers<[1], [0], [0], [1], [0, 0, 1, 1], [], []>} : vector<256x128xbf16>, vector<128x256xbf16>, vector<256x256xf32> -> vector<256x256xf32>
    %c0_3 = arith.constant 0 : index
    %c0_4 = arith.constant 0 : index
    %3 = vector.load %arg3[%c0_3, %c0_4] : memref<1x256xf32, #tpu.memory_space<vmem>>, vector<1x256xf32>
    %4 = vector.broadcast %3 : vector<1x256xf32> to vector<256x256xf32>
    %5 = arith.addf %2, %4 : vector<256x256xf32>
    %cst_5 = arith.constant 0.000000e+00 : f32
    %6 = vector.broadcast %cst_5 : f32 to vector<256x256xf32>
    %7 = arith.maximumf %5, %6 : vector<256x256xf32>
    %8 = arith.truncf %7 : vector<256x256xf32> to vector<256x256xbf16>
    %c0_6 = arith.constant 0 : index
    %c0_7 = arith.constant 0 : index
    %9 = vector.load %arg4[%c0_6, %c0_7] : memref<256x128xbf16, #tpu.memory_space<vmem>>, vector<256x128xbf16>
    %cst_8 = arith.constant dense<0.000000e+00> : vector<256x128xf32>
    %10 = tpu.matmul %8, %9, %cst_8 {dimension_numbers = #tpu.dot_dimension_numbers<[1], [0], [0], [1], [0, 0, 1, 1], [], []>} : vector<256x256xbf16>, vector<256x128xbf16>, vector<256x128xf32> -> vector<256x128xf32>
    %c0_9 = arith.constant 0 : index
    %c0_10 = arith.constant 0 : index
    %11 = vector.load %arg5[%c0_9, %c0_10] : memref<1x128xf32, #tpu.memory_space<vmem>>, vector<1x128xf32>
    %12 = vector.broadcast %11 : vector<1x128xf32> to vector<256x128xf32>
    %13 = arith.addf %10, %12 : vector<256x128xf32>
    %cst_11 = arith.constant 0.000000e+00 : f32
    %14 = vector.broadcast %cst_11 : f32 to vector<256x128xf32>
    %15 = arith.maximumf %13, %14 : vector<256x128xf32>
    %c0_12 = arith.constant 0 : index
    %c0_13 = arith.constant 0 : index
    %16 = vector.load %arg6[%c0_12, %c0_13] : memref<256x128xf32, #tpu.memory_space<vmem>>, vector<256x128xf32>
    tpu.vector_store %arg6[%c0_12, %c0_13], %15 {strides = array<i32>} : memref<256x128xf32, #tpu.memory_space<vmem>>, vector<256x128xf32>,
    return
  }
  func.func @transform_0(%arg0: i32) -> (i32, i32) {
    %c0_i32 = arith.constant 0 : i32
    %c0_i32_0 = arith.constant 0 : i32
    return %arg0, %c0_i32 : i32, i32
  }
  func.func @transform_1(%arg0: i32) -> (i32, i32) {
    %c0_i32 = arith.constant 0 : i32
    %c0_i32_0 = arith.constant 0 : i32
    %c0_i32_1 = arith.constant 0 : i32
    return %c0_i32, %c0_i32_0 : i32, i32
  }
  func.func @transform_2(%arg0: i32) -> (i32, i32) {
    %c0_i32 = arith.constant 0 : i32
    %c0_i32_0 = arith.constant 0 : i32
    %c0_i32_1 = arith.constant 0 : i32
    return %c0_i32, %c0_i32_0 : i32, i32
  }
  func.func @transform_3(%arg0: i32) -> (i32, i32) {
    %c0_i32 = arith.constant 0 : i32
    %c0_i32_0 = arith.constant 0 : i32
    %c0_i32_1 = arith.constant 0 : i32
    return %c0_i32, %c0_i32_0 : i32, i32
  }
  func.func @transform_4(%arg0: i32) -> (i32, i32) {
    %c0_i32 = arith.constant 0 : i32
    %c0_i32_0 = arith.constant 0 : i32
    %c0_i32_1 = arith.constant 0 : i32
    return %c0_i32, %c0_i32_0 : i32, i32
  }
  func.func @transform_5(%arg0: i32) -> (i32, i32) {
    %c0_i32 = arith.constant 0 : i32
    %c0_i32_0 = arith.constant 0 : i32
    return %arg0, %c0_i32 : i32, i32
  }
}

</mosaic_0001>

<llo_original>
// kernel: tpu_custom_call.1
$region0: #{tpu_custom_call.1}
  #allocation0 [shape = 'u32[]', space=smem, size = 0x4, offset = 0x4, fixed_abs, tag = 'smem constant byte address 0x4 - core index']
  #allocation1 [shape = 'u32[144,128]{1,0:T(1,128)}', space=vmem, size = 0x12000, scoped, tag = 'internal scratch']
  %s0 = inlined_call_operand.hbm [shape: bf16[512,128], index: 0, kind: input, shape index: {}]
  %s1 = inlined_call_operand.hbm [shape: bf16[128,256], index: 1, kind: input, shape index: {}]
  %s2 = inlined_call_operand.vmem [shape: f32[1,256], index: 2, kind: input, shape index: {}]
  %s3 = inlined_call_operand.hbm [shape: bf16[256,128], index: 3, kind: input, shape index: {}]
  %s4 = inlined_call_operand.vmem [shape: f32[1,128], index: 4, kind: input, shape index: {}]
  %s5 = inlined_call_operand.hbm [shape: f32[512,128], index: 5, kind: output, shape index: {}]
  %s6 = sld [smem:[#allocation0]]
  $region65: #{tpu_custom_call.1} parent=0
    _
  %s8 = ssub.s32 1, %s6
  %s9 = scalar_select 0, %s8, %s6
  $region1: #{tpu_custom_call.1} parent=0
    #allocation2 [shape = 'u8[131072]{0}', space=vmem, size = 0x20000, scoped, tag = 'input window, operand 0']
    #allocation3 [shape = 's32[2]{0}', space=sflag, size = 0x8, scoped, tag = 'scoped memory for tpu_custom_call.1']
    #allocation4 [shape = 's32[2]{0}', space=sflag, size = 0x8, scoped, tag = 'scoped memory for tpu_custom_call.1']
    #allocation5 [shape = 'u8[65536]{0}', space=vmem, size = 0x10000, scoped, tag = 'input window, operand 1, single buffered']
    #allocation6 [shape = 's32[1]{0}', space=sflag, size = 0x4, scoped, tag = 'scoped memory for tpu_custom_call.1']
    #allocation7 [shape = 'u8[65536]{0}', space=vmem, size = 0x10000, scoped, tag = 'input window, operand 3, single buffered']
    #allocation8 [shape = 'u8[262144]{0}', space=vmem, size = 0x40000, scoped, tag = 'output window, operand 0']
    %10 = vsyncpa [#allocation3], 0
    %s11 = scalar_lea.sflag [#allocation3], 1
    %12 = vsyncpa %s11, 0
    %13 = vsyncpa [#allocation6], 0
    %14 = vsyncpa [#allocation4], 0
    %s15 = scalar_lea.sflag [#allocation4], 1
    %16 = vsyncpa %s15, 0
    loop: start=0, step=1, limit=4
    $region2: #{tpu_custom_call.1} parent=1 // loop_pre_header
      _
    $region3: #{tpu_custom_call.1} parent=1 // loop_header
      %s18 = sphi 0, %s22
      %p19 = scmp.ge.s32.totalorder %s18, 4
      %s28 = sphi 0, %s30
      %s31 = sphi 0, %s28
      %s32 = sphi 0, %s31
      %s48 = sphi 0, %s32
      %s52 = sphi 0, %s52
      %s54 = sphi 0, %s52
      %s55 = sphi 0, %s54
      %s69 = sphi 0, %s55
      %s73 = sphi 0, %s73
      %s75 = sphi 0, %s73
      %s76 = sphi 0, %s75
      %s90 = sphi 0, %s76
      %s94 = sphi 0, %s94
      %s96 = sphi 0, %s94
      %s97 = sphi 0, %s96
      %s111 = sphi 0, %s97
      %s115 = sphi 0, %s115
      %s117 = sphi 0, %s115
      %s118 = sphi 0, %s117
      %s132 = sphi 0, %s118
      %s138 = sphi 0, %s140
      %s141 = sphi 0, %s138
      %s142 = sphi 0, %s141
      %s158 = sphi 0, %s142
    $region4: #{tpu_custom_call.1} parent=1 // loop_header_branch
      %21 = sbr.rel (%p19) target = $region8
    $region5: #{tpu_custom_call.1} parent=1 // loop_body
      %s23 = ssub.s32 %s18, 1
      %s24 = ssub.s32 %s18, 2
      %s25 = sadd.s32 %s18, 1
      %s26 = ssub.s32 %s18, %s25
      %p27 = scmp.eq.s32.totalorder %s26, 0
      %s29 = sadd.s32 %s28, 1
      %s30 = scalar_select %p27, %s28, %s29
      %p33 = pneg %p27
      %p34 = scmp.eq.s32.totalorder %s18, 1
      %p35 = por %p33, %p34
      %p36 = scmp.ne.s32.totalorder %s28, %s31
      %p37 = scmp.eq.s32.totalorder %s18, 0
      %p38 = por %p36, %p37
      %p39 = scmp.ne.s32.totalorder %s28, %s31
      %p40 = scmp.eq.s32.totalorder %s23, 1
      %p41 = por %p39, %p40
      %p42 = scmp.ne.s32.totalorder %s31, %s32
      %p43 = scmp.eq.s32.totalorder %s23, 0
      %p44 = por %p42, %p43
      %p45 = scmp.ne.s32.totalorder %s31, %s32
      %p46 = scmp.eq.s32.totalorder %s24, 1
      %p47 = por %p45, %p46
      %p49 = scmp.ne.s32.totalorder %s32, %s48
      %p50 = scmp.eq.s32.totalorder %s24, 0
      %p51 = por %p49, %p50
      %s53 = sadd.s32 %s52, 1
      %p56 = scmp.eq.s32.totalorder %s18, 1
      %p57 = scmp.ne.s32.totalorder %s52, %s54
      %p58 = scmp.eq.s32.totalorder %s18, 0
      %p59 = por %p57, %p58
      %p60 = scmp.ne.s32.totalorder %s52, %s54
      %p61 = scmp.eq.s32.totalorder %s23, 1
      %p62 = por %p60, %p61
      %p63 = scmp.ne.s32.totalorder %s54, %s55
      %p64 = scmp.eq.s32.totalorder %s23, 0
      %p65 = por %p63, %p64
      %p66 = scmp.ne.s32.totalorder %s54, %s55
      %p67 = scmp.eq.s32.totalorder %s24, 1
      %p68 = por %p66, %p67
      %p70 = scmp.ne.s32.totalorder %s55, %s69
      %p71 = scmp.eq.s32.totalorder %s24, 0
      %p72 = por %p70, %p71
      %s74 = sadd.s32 %s73, 1
      %p77 = scmp.eq.s32.totalorder %s18, 1
      %p78 = scmp.ne.s32.totalorder %s73, %s75
      %p79 = scmp.eq.s32.totalorder %s18, 0
      %p80 = por %p78, %p79
      %p81 = scmp.ne.s32.totalorder %s73, %s75
      %p82 = scmp.eq.s32.totalorder %s23, 1
      %p83 = por %p81, %p82
      %p84 = scmp.ne.s32.totalorder %s75, %s76
      %p85 = scmp.eq.s32.totalorder %s23, 0
      %p86 = por %p84, %p85
      %p87 = scmp.ne.s32.totalorder %s75, %s76
      %p88 = scmp.eq.s32.totalorder %s24, 1
      %p89 = por %p87, %p88
      %p91 = scmp.ne.s32.totalorder %s76, %s90
      %p92 = scmp.eq.s32.totalorder %s24, 0
      %p93 = por %p91, %p92
      %s95 = sadd.s32 %s94, 1
      %p98 = scmp.eq.s32.totalorder %s18, 1
      %p99 = scmp.ne.s32.totalorder %s94, %s96
      %p100 = scmp.eq.s32.totalorder %s18, 0
      %p101 = por %p99, %p100
      %p102 = scmp.ne.s32.totalorder %s94, %s96
      %p103 = scmp.eq.s32.totalorder %s23, 1
      %p104 = por %p102, %p103
      %p105 = scmp.ne.s32.totalorder %s96, %s97
      %p106 = scmp.eq.s32.totalorder %s23, 0
      %p107 = por %p105, %p106
      %p108 = scmp.ne.s32.totalorder %s96, %s97
      %p109 = scmp.eq.s32.totalorder %s24, 1
      %p110 = por %p108, %p109
      %p112 = scmp.ne.s32.totalorder %s97, %s111
      %p113 = scmp.eq.s32.totalorder %s24, 0
      %p114 = por %p112, %p113
      %s116 = sadd.s32 %s115, 1
      %p119 = scmp.eq.s32.totalorder %s18, 1
      %p120 = scmp.ne.s32.totalorder %s115, %s117
      %p121 = scmp.eq.s32.totalorder %s18, 0
      %p122 = por %p120, %p121
      %p123 = scmp.ne.s32.totalorder %s115, %s117
      %p124 = scmp.eq.s32.totalorder %s23, 1
      %p125 = por %p123, %p124
      %p126 = scmp.ne.s32.totalorder %s117, %s118
      %p127 = scmp.eq.s32.totalorder %s23, 0
      %p128 = por %p126, %p127
      %p129 = scmp.ne.s32.totalorder %s117, %s118
      %p130 = scmp.eq.s32.totalorder %s24, 1
      %p131 = por %p129, %p130
      %p133 = scmp.ne.s32.totalorder %s118, %s132
      %p134 = scmp.eq.s32.totalorder %s24, 0
      %p135 = por %p133, %p134
      %s136 = ssub.s32 %s18, %s25
      %p137 = scmp.eq.s32.totalorder %s136, 0
      %s139 = sadd.s32 %s138, 1
      %s140 = scalar_select %p137, %s138, %s139
      %p143 = pneg %p137
      %p144 = scmp.eq.s32.totalorder %s18, 1
      %p145 = por %p143, %p144
      %p146 = scmp.ne.s32.totalorder %s138, %s141
      %p147 = scmp.eq.s32.totalorder %s18, 0
      %p148 = por %p146, %p147
      %p149 = scmp.ne.s32.totalorder %s138, %s141
      %p150 = scmp.eq.s32.totalorder %s23, 1
      %p151 = por %p149, %p150
      %p152 = scmp.ne.s32.totalorder %s141, %s142
      %p153 = scmp.eq.s32.totalorder %s23, 0
      %p154 = por %p152, %p153
      %p155 = scmp.ne.s32.totalorder %s141, %s142
      %p156 = scmp.eq.s32.totalorder %s24, 1
      %p157 = por %p155, %p156
      %p159 = scmp.ne.s32.totalorder %s142, %s158
      %p160 = scmp.eq.s32.totalorder %s24, 0
      %p161 = por %p159, %p160
      %p162 = scmp.le.s32.totalorder 1, %s18
      %p163 = scmp.lt.s32.totalorder %s18, 3
      %p164 = pnand %p162, %p163
      %p165 = pneg %p164
      // Predicated region
      $region9: #{tpu_custom_call.1} parent=5 // pred_check
        _
      $region10: #{tpu_custom_call.1} parent=5 // pred_check_branch
        %167 = sbr.rel (%p164) target = $region12
      $region11: #{tpu_custom_call.1} parent=5 // pred_region
        %s168 = ssub.s32 %s18, 1
        // Predicated region
        $region13: #{tpu_custom_call.1} parent=11 // pred_check
          %p169 = pneg %p65
        $region14: #{tpu_custom_call.1} parent=11 // pred_check_branch
          %171 = sbr.rel (%p169) target = $region16
        $region15: #{tpu_custom_call.1} parent=11 // pred_region
          %s173 = ssub.s32 2048, 2048
          %174 = vsyncadd [#allocation6], %s173
          %s175 = sshll.u32 [#allocation5], 4
          %s176 = int_to_ptr.vmem [resolvable:$true] %s175
          %181 = dma.hbm_to_vmem [thread:$0]  %s1, 2048, %s176, [#allocation6], 128, 128, 8
        $region16: #{tpu_custom_call.1} parent=11 // pred_fallthru
          _
        // Predicated region
        $region17: #{tpu_custom_call.1} parent=11 // pred_check
          %p182 = pneg %p86
        $region18: #{tpu_custom_call.1} parent=11 // pred_check_branch
          %184 = sbr.rel (%p182) target = $region20
        $region19: #{tpu_custom_call.1} parent=11 // pred_region
          _
        $region20: #{tpu_custom_call.1} parent=11 // pred_fallthru
          _
        // Predicated region
        $region21: #{tpu_custom_call.1} parent=11 // pred_check
          %p185 = pneg %p107
        $region22: #{tpu_custom_call.1} parent=11 // pred_check_branch
          %187 = sbr.rel (%p185) target = $region24
        $region23: #{tpu_custom_call.1} parent=11 // pred_region
          %s189 = ssub.s32 2048, 2048
          %190 = vsyncadd [#allocation6], %s189
          %s191 = sshll.u32 [#allocation7], 4
          %s192 = int_to_ptr.vmem [resolvable:$true] %s191
          %197 = dma.hbm_to_vmem [thread:$0]  %s3, 2048, %s192, [#allocation6], 64, 64, 4
        $region24: #{tpu_custom_call.1} parent=11 // pred_fallthru
          _
        // Predicated region
        $region25: #{tpu_custom_call.1} parent=11 // pred_check
          %p198 = pneg %p128
        $region26: #{tpu_custom_call.1} parent=11 // pred_check_branch
          %200 = sbr.rel (%p198) target = $region28
        $region27: #{tpu_custom_call.1} parent=11 // pred_region
          _
        $region28: #{tpu_custom_call.1} parent=11 // pred_fallthru
          _
      $region12: #{tpu_custom_call.1} parent=5 // pred_fallthru
        _
      %p201 = scmp.lt.s32.totalorder %s18, 2
      // Predicated region
      $region29: #{tpu_custom_call.1} parent=5 // pred_check
        %p202 = pneg %p201
      $region30: #{tpu_custom_call.1} parent=5 // pred_check_branch
        %204 = sbr.rel (%p202) target = $region32
      $region31: #{tpu_custom_call.1} parent=5 // pred_region
        // Predicated region
        $region33: #{tpu_custom_call.1} parent=31 // pred_check
          %p205 = pneg %p38
        $region34: #{tpu_custom_call.1} parent=31 // pred_check_branch
          %207 = sbr.rel (%p205) target = $region36
        $region35: #{tpu_custom_call.1} parent=31 // pred_region
          %s208 = sand.u32 %s28, 1
          %s209 = scalar_lea.sflag [#allocation3], %s208
          %s210 = sand.u32 %s28, 1
          %s211 = smul.addr %s210, 128
          %s212 = scalar_lea.vmem [#allocation2], %s211
          %s213 = smul.u32 32, %s18
          %s215 = ssub.s32 2048, 2048
          %216 = vsyncadd %s209, %s215
          %s217 = smul.addr %s213, 64
          %s218 = scalar_lea.hbm %s0, %s217
          %s219 = sshll.u32 %s212, 4
          %s220 = int_to_ptr.vmem [resolvable:$true] %s219
          %225 = dma.hbm_to_vmem [thread:$0]  %s218, 2048, %s220, %s209, 64, 64, 4
        $region36: #{tpu_custom_call.1} parent=31 // pred_fallthru
          _
      $region32: #{tpu_custom_call.1} parent=5 // pred_fallthru
        _
      %p226 = scmp.le.s32.totalorder 1, %s18
      %p227 = scmp.lt.s32.totalorder %s18, 3
      %p228 = pnand %p226, %p227
      %p229 = pneg %p228
      // Predicated region
      $region37: #{tpu_custom_call.1} parent=5 // pred_check
        _
      $region38: #{tpu_custom_call.1} parent=5 // pred_check_branch
        %231 = sbr.rel (%p228) target = $region40
      $region39: #{tpu_custom_call.1} parent=5 // pred_region
        %s232 = ssub.s32 %s18, 1
        %s233 = sand.u32 %s31, 1
        %s234 = scalar_lea.sflag [#allocation3], %s233
        %s235 = sand.u32 %s31, 1
        %s236 = smul.addr %s235, 128
        %s237 = scalar_lea.vmem [#allocation2], %s236
        // Predicated region
        $region41: #{tpu_custom_call.1} parent=39 // pred_check
          %p238 = pneg %p44
        $region42: #{tpu_custom_call.1} parent=39 // pred_check_branch
          %240 = sbr.rel (%p238) target = $region44
        $region43: #{tpu_custom_call.1} parent=39 // pred_region
          %241 = dma.done %s234, 2048
        $region44: #{tpu_custom_call.1} parent=39 // pred_fallthru
          _
        // Predicated region
        $region45: #{tpu_custom_call.1} parent=39 // pred_check
          %p242 = pneg %p65
        $region46: #{tpu_custom_call.1} parent=39 // pred_check_branch
          %244 = sbr.rel (%p242) target = $region48
        $region47: #{tpu_custom_call.1} parent=39 // pred_region
          %245 = dma.done [#allocation6], 2048
        $region48: #{tpu_custom_call.1} parent=39 // pred_fallthru
          _
        // Predicated region
        $region49: #{tpu_custom_call.1} parent=39 // pred_check
          %p246 = pneg %p107
        $region50: #{tpu_custom_call.1} parent=39 // pred_check_branch
          %248 = sbr.rel (%p246) target = $region52
        $region51: #{tpu_custom_call.1} parent=39 // pred_region
          %249 = dma.done [#allocation6], 2048
        $region52: #{tpu_custom_call.1} parent=39 // pred_fallthru
          _
        %s250 = sand.u32 %s31, 1
        %s251 = scalar_lea.sflag [#allocation3], %s250
        %s252 = sand.u32 %s31, 1
        %s253 = smul.addr %s252, 128
        %s254 = scalar_lea.vmem [#allocation2], %s253
        %p255 = pneg %p44
        %p256 = pneg %p41
        %p257 = pneg %p65
        %p258 = pneg %p62
        %p259 = pneg %p86
        %p260 = pneg %p83
        %p261 = pneg %p107
        %p262 = pneg %p104
        %p263 = pneg %p128
        %p264 = pneg %p125
        %p265 = pneg %p154
        %p266 = pneg %p151
        %s267 = sand.u32 %s141, 1
        %s268 = scalar_lea.sflag [#allocation4], %s267
        %s269 = sand.u32 %s141, 1
        %s270 = smul.addr %s269, 256
        %s271 = scalar_lea.vmem [#allocation8], %s270
        %s272 = smul.u32 32, %s23
        %s273 = smul.u32 32, %s23
        %v275 = vld [vmem:[%s237] sm:$0xf]
        %v276 = vld [vmem:[%s237 + $0x4] sm:$0xf]
        %v277 = vld [vmem:[%s237 + $0x8] sm:$0xf]
        %v278 = vld [vmem:[%s237 + $0xc] sm:$0xf]
        %v279 = vld [vmem:[%s237 + $0x10] sm:$0xf]
        %v280 = vld [vmem:[%s237 + $0x14] sm:$0xf]
        %v281 = vld [vmem:[%s237 + $0x18] sm:$0xf]
        %v282 = vld [vmem:[%s237 + $0x1c] sm:$0xf]
        %v283 = vld [vmem:[%s237 + $0x20] sm:$0xf]
        %v284 = vld [vmem:[%s237 + $0x24] sm:$0xf]
        %v285 = vld [vmem:[%s237 + $0x28] sm:$0xf]
        %v286 = vld [vmem:[%s237 + $0x2c] sm:$0xf]
        %v287 = vld [vmem:[%s237 + $0x30] sm:$0xf]
        %v288 = vld [vmem:[%s237 + $0x34] sm:$0xf]
        %v289 = vld [vmem:[%s237 + $0x38] sm:$0xf]
        %v290 = vld [vmem:[%s237 + $0x3c] sm:$0xf]
        %v291 = vld [vmem:[%s237 + $0x40] sm:$0xf]
        %v292 = vld [vmem:[%s237 + $0x44] sm:$0xf]
        %v293 = vld [vmem:[%s237 + $0x48] sm:$0xf]
        %v294 = vld [vmem:[%s237 + $0x4c] sm:$0xf]
        %v295 = vld [vmem:[%s237 + $0x50] sm:$0xf]
        %v296 = vld [vmem:[%s237 + $0x54] sm:$0xf]
        %v297 = vld [vmem:[%s237 + $0x58] sm:$0xf]
        %v298 = vld [vmem:[%s237 + $0x5c] sm:$0xf]
        %v299 = vld [vmem:[%s237 + $0x60] sm:$0xf]
        %v300 = vld [vmem:[%s237 + $0x64] sm:$0xf]
        %v301 = vld [vmem:[%s237 + $0x68] sm:$0xf]
        %v302 = vld [vmem:[%s237 + $0x6c] sm:$0xf]
        %v303 = vld [vmem:[%s237 + $0x70] sm:$0xf]
        %v304 = vld [vmem:[%s237 + $0x74] sm:$0xf]
        %v305 = vld [vmem:[%s237 + $0x78] sm:$0xf]
        %v306 = vld [vmem:[%s237 + $0x7c] sm:$0xf]
        %v307 = vld [vmem:[#allocation5] sm:$0xff]
        %v308 = vld [vmem:[#allocation5 + $0x8] sm:$0xff]
        %v309 = vld [vmem:[#allocation5 + $0x10] sm:$0xff]
        %v310 = vld [vmem:[#allocation5 + $0x18] sm:$0xff]
        %v311 = vld [vmem:[#allocation5 + $0x20] sm:$0xff]
        %v312 = vld [vmem:[#allocation5 + $0x28] sm:$0xff]
        %v313 = vld [vmem:[#allocation5 + $0x30] sm:$0xff]
        %v314 = vld [vmem:[#allocation5 + $0x38] sm:$0xff]
        %v315 = vld [vmem:[#allocation5 + $0x40] sm:$0xff]
        %v316 = vld [vmem:[#allocation5 + $0x48] sm:$0xff]
        %v317 = vld [vmem:[#allocation5 + $0x50] sm:$0xff]
        %v318 = vld [vmem:[#allocation5 + $0x58] sm:$0xff]
        %v319 = vld [vmem:[#allocation5 + $0x60] sm:$0xff]
        %v320 = vld [vmem:[#allocation5 + $0x68] sm:$0xff]
        %v321 = vld [vmem:[#allocation5 + $0x70] sm:$0xff]
        %v322 = vld [vmem:[#allocation5 + $0x78] sm:$0xff]
        %v323 = vld [vmem:[%s2] sm:$0x3]
        %v325 = vlaneseq
        %v326 = vshrl.u32 %v325, 7
        %v327 = vsub.s32 0, %v326
        %v328 = vrot.slane %v323, %v327
        %v329 = vlaneseq
        %v330 = vshrl.u32 %v329, 7
        %v331 = vsub.s32 1, %v330
        %v332 = vrot.slane %v323, %v331
        %v367 = vunpack.c.l.b16 %v275
        %v368 = vunpack.c.l.b16 %v276
        %v369 = vunpack.c.l.b16 %v277
        %v370 = vunpack.c.l.b16 %v278
        %v371 = vunpack.c.l.b16 %v279
        %v372 = vunpack.c.l.b16 %v280
        %v373 = vunpack.c.l.b16 %v281
        %v374 = vunpack.c.l.b16 %v282
        %v375 = vunpack.c.l.b16 %v283
        %v376 = vunpack.c.l.b16 %v284
        %v377 = vunpack.c.l.b16 %v285
        %v378 = vunpack.c.l.b16 %v286
        %v379 = vunpack.c.l.b16 %v287
        %v380 = vunpack.c.l.b16 %v288
        %v381 = vunpack.c.l.b16 %v289
        %v382 = vunpack.c.l.b16 %v290
        %v383 = vunpack.c.l.b16 %v291
        %v384 = vunpack.c.l.b16 %v292
        %v385 = vunpack.c.l.b16 %v293
        %v386 = vunpack.c.l.b16 %v294
        %v387 = vunpack.c.l.b16 %v295
        %v388 = vunpack.c.l.b16 %v296
        %v389 = vunpack.c.l.b16 %v297
        %v390 = vunpack.c.l.b16 %v298
        %v391 = vunpack.c.l.b16 %v299
        %v392 = vunpack.c.l.b16 %v300
        %v393 = vunpack.c.l.b16 %v301
        %v394 = vunpack.c.l.b16 %v302
        %v395 = vunpack.c.l.b16 %v303
        %v396 = vunpack.c.l.b16 %v304
        %v397 = vunpack.c.l.b16 %v305
        %v398 = vunpack.c.l.b16 %v306
        %v399 = vpack.c.b16 %v368, %v367
        %v400 = vpack.c.b16 %v370, %v369
        %v401 = vpack.c.b16 %v372, %v371
        %v402 = vpack.c.b16 %v374, %v373
        %v403 = vpack.c.b16 %v376, %v375
        %v404 = vpack.c.b16 %v378, %v377
        %v405 = vpack.c.b16 %v380, %v379
        %v406 = vpack.c.b16 %v382, %v381
        %v407 = vpack.c.b16 %v384, %v383
        %v408 = vpack.c.b16 %v386, %v385
        %v409 = vpack.c.b16 %v388, %v387
        %v410 = vpack.c.b16 %v390, %v389
        %v411 = vpack.c.b16 %v392, %v391
        %v412 = vpack.c.b16 %v394, %v393
        %v413 = vpack.c.b16 %v396, %v395
        %v414 = vpack.c.b16 %v398, %v397
        %v447 = vunpack.c.l.b16 %v307
        %v448 = vunpack.c.h.b16 %v307
        %v449 = vunpack.c.l.b16 %v308
        %v450 = vunpack.c.h.b16 %v308
        %v451 = vunpack.c.l.b16 %v309
        %v452 = vunpack.c.h.b16 %v309
        %v453 = vunpack.c.l.b16 %v310
        %v454 = vunpack.c.h.b16 %v310
        %v455 = vunpack.c.l.b16 %v311
        %v456 = vunpack.c.h.b16 %v311
        %v457 = vunpack.c.l.b16 %v312
        %v458 = vunpack.c.h.b16 %v312
        %v459 = vunpack.c.l.b16 %v313
        %v460 = vunpack.c.h.b16 %v313
        %v461 = vunpack.c.l.b16 %v314
        %v462 = vunpack.c.h.b16 %v314
        %v463 = vunpack.c.l.b16 %v315
        %v464 = vunpack.c.h.b16 %v315
        %v465 = vunpack.c.l.b16 %v316
        %v466 = vunpack.c.h.b16 %v316
        %v467 = vunpack.c.l.b16 %v317
        %v468 = vunpack.c.h.b16 %v317
        %v469 = vunpack.c.l.b16 %v318
        %v470 = vunpack.c.h.b16 %v318
        %v471 = vunpack.c.l.b16 %v319
        %v472 = vunpack.c.h.b16 %v319
        %v473 = vunpack.c.l.b16 %v320
        %v474 = vunpack.c.h.b16 %v320
        %v475 = vunpack.c.l.b16 %v321
        %v476 = vunpack.c.h.b16 %v321
        %v477 = vunpack.c.l.b16 %v322
        %v478 = vunpack.c.h.b16 %v322
        %v479 = vpack.c.b16 %v449, %v447
        %v480 = vpack.c.b16 %v450, %v448
        %v481 = vpack.c.b16 %v453, %v451
        %v482 = vpack.c.b16 %v454, %v452
        %v483 = vpack.c.b16 %v457, %v455
        %v484 = vpack.c.b16 %v458, %v456
        %v485 = vpack.c.b16 %v461, %v459
        %v486 = vpack.c.b16 %v462, %v460
        %v487 = vpack.c.b16 %v465, %v463
        %v488 = vpack.c.b16 %v466, %v464
        %v489 = vpack.c.b16 %v469, %v467
        %v490 = vpack.c.b16 %v470, %v468
        %v491 = vpack.c.b16 %v473, %v471
        %v492 = vpack.c.b16 %v474, %v472
        %v493 = vpack.c.b16 %v477, %v475
        %v494 = vpack.c.b16 %v478, %v476
        %511 = vmatprep.subr.bf16.mxu0 %v480
        %512 = vmatpush1.bf16.msra.mxu0 %v479
        %513 = vmatprep.subr.bf16.mxu0 %v482
        %514 = vmatpush1.bf16.msra.mxu0 %v481
        %515 = vmatprep.subr.bf16.mxu0 %v484
        %516 = vmatpush1.bf16.msra.mxu0 %v483
        %517 = vmatprep.subr.bf16.mxu0 %v486
        %518 = vmatpush1.bf16.msra.mxu0 %v485
        %519 = vmatprep.subr.bf16.mxu0 %v488
        %520 = vmatpush1.bf16.msra.mxu0 %v487
        %521 = vmatprep.subr.bf16.mxu0 %v490
        %522 = vmatpush1.bf16.msra.mxu0 %v489
        %523 = vmatprep.subr.bf16.mxu0 %v492
        %524 = vmatpush1.bf16.msra.mxu0 %v491
        %525 = vmatprep.subr.bf16.mxu0 %v494
        %526 = vmatpush1.bf16.msra.mxu0 %v493
        %527 = vmatprep.subr.bf16.mxu0 0
        %528 = vmatpush1.bf16.msra.mxu0 0
        %529 = vmatprep.subr.bf16.mxu0 0
        %530 = vmatpush1.bf16.msra.mxu0 0
        %531 = vmatprep.subr.bf16.mxu0 0
        %532 = vmatpush1.bf16.msra.mxu0 0
        %533 = vmatprep.subr.bf16.mxu0 0
        %534 = vmatpush1.bf16.msra.mxu0 0
        %535 = vmatprep.subr.bf16.mxu0 0
        %536 = vmatpush1.bf16.msra.mxu0 0
        %537 = vmatprep.subr.bf16.mxu0 0
        %538 = vmatpush1.bf16.msra.mxu0 0
        %539 = vmatprep.subr.bf16.mxu0 0
        %540 = vmatpush1.bf16.msra.mxu0 0
        %541 = vmatprep.subr.bf16.mxu0 0
        %542 = vmatpush1.bf16.msra.mxu0 0
        %543 = vmatprep.mubr.bf16.mxu0 0
        %544 = vmatmul.mubr.bf16.gmra.mrb[0].mxu0 %v399
        %v545 = vpop.f32.mrb[0].mxu0
        %v546 = vadd.f32 %v328, %v545
        %v547 = vpop.f32.mrb[0].mxu0
        %v548 = vadd.f32 %v332, %v547
        %v549 = vpop.f32.mrb[0].mxu0
        %v550 = vadd.f32 %v328, %v549
        %v551 = vpop.f32.mrb[0].mxu0
        %v552 = vadd.f32 %v332, %v551
        %553 = vmatprep.mubr.bf16.mxu0 0
        %554 = vmatmul.mubr.bf16.gmra.mrb[0].mxu0 %v400
        %v555 = vpop.f32.mrb[0].mxu0
        %v556 = vadd.f32 %v328, %v555
        %v557 = vpop.f32.mrb[0].mxu0
        %v558 = vadd.f32 %v332, %v557
        %v559 = vpop.f32.mrb[0].mxu0
        %v560 = vadd.f32 %v328, %v559
        %v561 = vpop.f32.mrb[0].mxu0
        %v562 = vadd.f32 %v332, %v561
        %563 = vmatprep.mubr.bf16.mxu0 0
        %564 = vmatmul.mubr.bf16.gmra.mrb[0].mxu0 %v401
        %v565 = vpop.f32.mrb[0].mxu0
        %v566 = vadd.f32 %v328, %v565
        %v567 = vpop.f32.mrb[0].mxu0
        %v568 = vadd.f32 %v332, %v567
        %v569 = vpop.f32.mrb[0].mxu0
        %v570 = vadd.f32 %v328, %v569
        %v571 = vpop.f32.mrb[0].mxu0
        %v572 = vadd.f32 %v332, %v571
        %573 = vmatprep.mubr.bf16.mxu0 0
        %574 = vmatmul.mubr.bf16.gmra.mrb[0].mxu0 %v402
        %v575 = vpop.f32.mrb[0].mxu0
        %v576 = vadd.f32 %v328, %v575
        %v577 = vpop.f32.mrb[0].mxu0
        %v578 = vadd.f32 %v332, %v577
        %v579 = vpop.f32.mrb[0].mxu0
        %v580 = vadd.f32 %v328, %v579
        %v581 = vpop.f32.mrb[0].mxu0
        %v582 = vadd.f32 %v332, %v581
        %583 = vmatprep.mubr.bf16.mxu0 0
        %584 = vmatmul.mubr.bf16.gmra.mrb[0].mxu0 %v403
        %v585 = vpop.f32.mrb[0].mxu0
        %v586 = vadd.f32 %v328, %v585
        %v587 = vpop.f32.mrb[0].mxu0
        %v588 = vadd.f32 %v332, %v587
        %v589 = vpop.f32.mrb[0].mxu0
        %v590 = vadd.f32 %v328, %v589
        %v591 = vpop.f32.mrb[0].mxu0
        %v592 = vadd.f32 %v332, %v591
        %593 = vmatprep.mubr.bf16.mxu0 0
        %594 = vmatmul.mubr.bf16.gmra.mrb[0].mxu0 %v404
        %v595 = vpop.f32.mrb[0].mxu0
        %v596 = vadd.f32 %v328, %v595
        %v597 = vpop.f32.mrb[0].mxu0
        %v598 = vadd.f32 %v332, %v597
        %v599 = vpop.f32.mrb[0].mxu0
        %v600 = vadd.f32 %v328, %v599
        %v601 = vpop.f32.mrb[0].mxu0
        %v602 = vadd.f32 %v332, %v601
        %603 = vmatprep.mubr.bf16.mxu0 0
        %604 = vmatmul.mubr.bf16.gmra.mrb[0].mxu0 %v405
        %v605 = vpop.f32.mrb[0].mxu0
        %v606 = vadd.f32 %v328, %v605
        %v607 = vpop.f32.mrb[0].mxu0
        %v608 = vadd.f32 %v332, %v607
        %v609 = vpop.f32.mrb[0].mxu0
        %v610 = vadd.f32 %v328, %v609
        %v611 = vpop.f32.mrb[0].mxu0
        %v612 = vadd.f32 %v332, %v611
        %613 = vmatprep.mubr.bf16.mxu0 0
        %614 = vmatmul.mubr.bf16.gmra.mrb[0].mxu0 %v406
        %v615 = vpop.f32.mrb[0].mxu0
        %v616 = vadd.f32 %v328, %v615
        %v617 = vpop.f32.mrb[0].mxu0
        %v618 = vadd.f32 %v332, %v617
        %v619 = vpop.f32.mrb[0].mxu0
        %v620 = vadd.f32 %v328, %v619
        %v621 = vpop.f32.mrb[0].mxu0
        %v622 = vadd.f32 %v332, %v621
        %623 = vmatprep.mubr.bf16.mxu0 0
        %624 = vmatmul.mubr.bf16.gmra.mrb[0].mxu0 %v407
        %v625 = vpop.f32.mrb[0].mxu0
        %v626 = vadd.f32 %v328, %v625
        %v627 = vpop.f32.mrb[0].mxu0
        %v628 = vadd.f32 %v332, %v627
        %v629 = vpop.f32.mrb[0].mxu0
        %v630 = vadd.f32 %v328, %v629
        %v631 = vpop.f32.mrb[0].mxu0
        %v632 = vadd.f32 %v332, %v631
        %633 = vmatprep.mubr.bf16.mxu0 0
        %634 = vmatmul.mubr.bf16.gmra.mrb[0].mxu0 %v408
        %v635 = vpop.f32.mrb[0].mxu0
        %v636 = vadd.f32 %v328, %v635
        %v637 = vpop.f32.mrb[0].mxu0
        %v638 = vadd.f32 %v332, %v637
        %v639 = vpop.f32.mrb[0].mxu0
        %v640 = vadd.f32 %v328, %v639
        %v641 = vpop.f32.mrb[0].mxu0
        %v642 = vadd.f32 %v332, %v641
        %643 = vmatprep.mubr.bf16.mxu0 0
        %644 = vmatmul.mubr.bf16.gmra.mrb[0].mxu0 %v409
        %v645 = vpop.f32.mrb[0].mxu0
        %v646 = vadd.f32 %v328, %v645
        %v647 = vpop.f32.mrb[0].mxu0
        %v648 = vadd.f32 %v332, %v647
        %v649 = vpop.f32.mrb[0].mxu0
        %v650 = vadd.f32 %v328, %v649
        %v651 = vpop.f32.mrb[0].mxu0
        %v652 = vadd.f32 %v332, %v651
        %653 = vmatprep.mubr.bf16.mxu0 0
        %654 = vmatmul.mubr.bf16.gmra.mrb[0].mxu0 %v410
        %v655 = vpop.f32.mrb[0].mxu0
        %v656 = vadd.f32 %v328, %v655
        %v657 = vpop.f32.mrb[0].mxu0
        %v658 = vadd.f32 %v332, %v657
        %v659 = vpop.f32.mrb[0].mxu0
        %v660 = vadd.f32 %v328, %v659
        %v661 = vpop.f32.mrb[0].mxu0
        %v662 = vadd.f32 %v332, %v661
        %663 = vmatprep.mubr.bf16.mxu0 0
        %664 = vmatmul.mubr.bf16.gmra.mrb[0].mxu0 %v411
        %v665 = vpop.f32.mrb[0].mxu0
        %v666 = vadd.f32 %v328, %v665
        %v667 = vpop.f32.mrb[0].mxu0
        %v668 = vadd.f32 %v332, %v667
        %v669 = vpop.f32.mrb[0].mxu0
        %v670 = vadd.f32 %v328, %v669
        %v671 = vpop.f32.mrb[0].mxu0
        %v672 = vadd.f32 %v332, %v671
        %673 = vmatprep.mubr.bf16.mxu0 0
        %674 = vmatmul.mubr.bf16.gmra.mrb[0].mxu0 %v412
        %v675 = vpop.f32.mrb[0].mxu0
        %v676 = vadd.f32 %v328, %v675
        %v677 = vpop.f32.mrb[0].mxu0
        %v678 = vadd.f32 %v332, %v677
        %v679 = vpop.f32.mrb[0].mxu0
        %v680 = vadd.f32 %v328, %v679
        %v681 = vpop.f32.mrb[0].mxu0
        %v682 = vadd.f32 %v332, %v681
        %683 = vmatprep.mubr.bf16.mxu0 0
        %684 = vmatmul.mubr.bf16.gmra.mrb[0].mxu0 %v413
        %v685 = vpop.f32.mrb[0].mxu0
        %v686 = vadd.f32 %v328, %v685
        %v687 = vpop.f32.mrb[0].mxu0
        %v688 = vadd.f32 %v332, %v687
        %v689 = vpop.f32.mrb[0].mxu0
        %v690 = vadd.f32 %v328, %v689
        %v691 = vpop.f32.mrb[0].mxu0
        %v692 = vadd.f32 %v332, %v691
        %693 = vmatprep.mubr.bf16.mxu0 0
        %694 = vmatmul.mubr.bf16.gmra.mrb[0].mxu0 %v414
        %v695 = vpop.f32.mrb[0].mxu0
        %v696 = vadd.f32 %v328, %v695
        %v697 = vpop.f32.mrb[0].mxu0
        %v698 = vadd.f32 %v332, %v697
        %v699 = vpop.f32.mrb[0].mxu0
        %v700 = vadd.f32 %v328, %v699
        %v701 = vpop.f32.mrb[0].mxu0
        %v702 = vadd.f32 %v332, %v701
        %703 = vdwg.mxu0
        %v704 = vmax.f32 %v546, 0.0
        %v705 = vmax.f32 %v548, 0.0
        %v706 = vmax.f32 %v550, 0.0
        %v707 = vmax.f32 %v552, 0.0
        %v708 = vmax.f32 %v556, 0.0
        %v709 = vmax.f32 %v558, 0.0
        %v710 = vmax.f32 %v560, 0.0
        %v711 = vmax.f32 %v562, 0.0
        %v712 = vmax.f32 %v566, 0.0
        %v713 = vmax.f32 %v568, 0.0
        %v714 = vmax.f32 %v570, 0.0
        %v715 = vmax.f32 %v572, 0.0
        %v716 = vmax.f32 %v576, 0.0
        %v717 = vmax.f32 %v578, 0.0
        %v718 = vmax.f32 %v580, 0.0
        %v719 = vmax.f32 %v582, 0.0
        %v720 = vmax.f32 %v586, 0.0
        %v721 = vmax.f32 %v588, 0.0
        %v722 = vmax.f32 %v590, 0.0
        %v723 = vmax.f32 %v592, 0.0
        %v724 = vmax.f32 %v596, 0.0
        %v725 = vmax.f32 %v598, 0.0
        %v726 = vmax.f32 %v600, 0.0
        %v727 = vmax.f32 %v602, 0.0
        %v728 = vmax.f32 %v606, 0.0
        %v729 = vmax.f32 %v608, 0.0
        %v730 = vmax.f32 %v610, 0.0
        %v731 = vmax.f32 %v612, 0.0
        %v732 = vmax.f32 %v616, 0.0
        %v733 = vmax.f32 %v618, 0.0
        %v734 = vmax.f32 %v620, 0.0
        %v735 = vmax.f32 %v622, 0.0
        %v736 = vmax.f32 %v626, 0.0
        %v737 = vmax.f32 %v628, 0.0
        %v738 = vmax.f32 %v630, 0.0
        %v739 = vmax.f32 %v632, 0.0
        %v740 = vmax.f32 %v636, 0.0
        %v741 = vmax.f32 %v638, 0.0
        %v742 = vmax.f32 %v640, 0.0
        %v743 = vmax.f32 %v642, 0.0
        %v744 = vmax.f32 %v646, 0.0
        %v745 = vmax.f32 %v648, 0.0
        %v746 = vmax.f32 %v650, 0.0
        %v747 = vmax.f32 %v652, 0.0
        %v748 = vmax.f32 %v656, 0.0
        %v749 = vmax.f32 %v658, 0.0
        %v750 = vmax.f32 %v660, 0.0
        %v751 = vmax.f32 %v662, 0.0
        %v752 = vmax.f32 %v666, 0.0
        %v753 = vmax.f32 %v668, 0.0
        %v754 = vmax.f32 %v670, 0.0
        %v755 = vmax.f32 %v672, 0.0
        %v756 = vmax.f32 %v676, 0.0
        %v757 = vmax.f32 %v678, 0.0
        %v758 = vmax.f32 %v680, 0.0
        %v759 = vmax.f32 %v682, 0.0
        %v760 = vmax.f32 %v686, 0.0
        %v761 = vmax.f32 %v688, 0.0
        %v762 = vmax.f32 %v690, 0.0
        %v763 = vmax.f32 %v692, 0.0
        %v764 = vmax.f32 %v696, 0.0
        %v765 = vmax.f32 %v698, 0.0
        %v766 = vmax.f32 %v700, 0.0
        %v767 = vmax.f32 %v702, 0.0
        %v768 = vpack.c.bf16 %v706, %v704
        %v769 = vpack.c.bf16 %v707, %v705
        %v770 = vpack.c.bf16 %v710, %v708
        %v771 = vpack.c.bf16 %v711, %v709
        %v772 = vpack.c.bf16 %v714, %v712
        %v773 = vpack.c.bf16 %v715, %v713
        %v774 = vpack.c.bf16 %v718, %v716
        %v775 = vpack.c.bf16 %v719, %v717
        %v776 = vpack.c.bf16 %v722, %v720
        %v777 = vpack.c.bf16 %v723, %v721
        %v778 = vpack.c.bf16 %v726, %v724
        %v779 = vpack.c.bf16 %v727, %v725
        %v780 = vpack.c.bf16 %v730, %v728
        %v781 = vpack.c.bf16 %v731, %v729
        %v782 = vpack.c.bf16 %v734, %v732
        %v783 = vpack.c.bf16 %v735, %v733
        %v784 = vpack.c.bf16 %v738, %v736
        %v785 = vpack.c.bf16 %v739, %v737
        %v786 = vpack.c.bf16 %v742, %v740
        %v787 = vpack.c.bf16 %v743, %v741
        %v788 = vpack.c.bf16 %v746, %v744
        %v789 = vpack.c.bf16 %v747, %v745
        %v790 = vpack.c.bf16 %v750, %v748
        %v791 = vpack.c.bf16 %v751, %v749
        %v792 = vpack.c.bf16 %v754, %v752
        %v793 = vpack.c.bf16 %v755, %v753
        %v794 = vpack.c.bf16 %v758, %v756
        %v795 = vpack.c.bf16 %v759, %v757
        %v796 = vpack.c.bf16 %v762, %v760
        %v797 = vpack.c.bf16 %v763, %v761
        %v798 = vpack.c.bf16 %v766, %v764
        %v799 = vpack.c.bf16 %v767, %v765
        %v800 = vld [vmem:[#allocation7] sm:$0xf]
        %v801 = vld [vmem:[#allocation7 + $0x4] sm:$0xf]
        %v802 = vld [vmem:[#allocation7 + $0x8] sm:$0xf]
        %v803 = vld [vmem:[#allocation7 + $0xc] sm:$0xf]
        %v804 = vld [vmem:[#allocation7 + $0x10] sm:$0xf]
        %v805 = vld [vmem:[#allocation7 + $0x14] sm:$0xf]
        %v806 = vld [vmem:[#allocation7 + $0x18] sm:$0xf]
        %v807 = vld [vmem:[#allocation7 + $0x1c] sm:$0xf]
        %v808 = vld [vmem:[#allocation7 + $0x20] sm:$0xf]
        %v809 = vld [vmem:[#allocation7 + $0x24] sm:$0xf]
        %v810 = vld [vmem:[#allocation7 + $0x28] sm:$0xf]
        %v811 = vld [vmem:[#allocation7 + $0x2c] sm:$0xf]
        %v812 = vld [vmem:[#allocation7 + $0x30] sm:$0xf]
        %v813 = vld [vmem:[#allocation7 + $0x34] sm:$0xf]
        %v814 = vld [vmem:[#allocation7 + $0x38] sm:$0xf]
        %v815 = vld [vmem:[#allocation7 + $0x3c] sm:$0xf]
        %v816 = vld [vmem:[#allocation7 + $0x40] sm:$0xf]
        %v817 = vld [vmem:[#allocation7 + $0x44] sm:$0xf]
        %v818 = vld [vmem:[#allocation7 + $0x48] sm:$0xf]
        %v819 = vld [vmem:[#allocation7 + $0x4c] sm:$0xf]
        %v820 = vld [vmem:[#allocation7 + $0x50] sm:$0xf]
        %v821 = vld [vmem:[#allocation7 + $0x54] sm:$0xf]
        %v822 = vld [vmem:[#allocation7 + $0x58] sm:$0xf]
        %v823 = vld [vmem:[#allocation7 + $0x5c] sm:$0xf]
        %v824 = vld [vmem:[#allocation7 + $0x60] sm:$0xf]
        %v825 = vld [vmem:[#allocation7 + $0x64] sm:$0xf]
        %v826 = vld [vmem:[#allocation7 + $0x68] sm:$0xf]
        %v827 = vld [vmem:[#allocation7 + $0x6c] sm:$0xf]
        %v828 = vld [vmem:[#allocation7 + $0x70] sm:$0xf]
        %v829 = vld [vmem:[#allocation7 + $0x74] sm:$0xf]
        %v830 = vld [vmem:[#allocation7 + $0x78] sm:$0xf]
        %v831 = vld [vmem:[#allocation7 + $0x7c] sm:$0xf]
        %v832 = vld [vmem:[%s4] sm:$0x1]
        %v834 = vlaneseq
        %v835 = vshrl.u32 %v834, 7
        %v836 = vsub.s32 0, %v835
        %v837 = vrot.slane %v832, %v836
        %v871 = vunpack.c.l.b16 %v800
        %v872 = vunpack.c.l.b16 %v801
        %v873 = vunpack.c.l.b16 %v802
        %v874 = vunpack.c.l.b16 %v803
        %v875 = vunpack.c.l.b16 %v804
        %v876 = vunpack.c.l.b16 %v805
        %v877 = vunpack.c.l.b16 %v806
        %v878 = vunpack.c.l.b16 %v807
        %v879 = vunpack.c.l.b16 %v808
        %v880 = vunpack.c.l.b16 %v809
        %v881 = vunpack.c.l.b16 %v810
        %v882 = vunpack.c.l.b16 %v811
        %v883 = vunpack.c.l.b16 %v812
        %v884 = vunpack.c.l.b16 %v813
        %v885 = vunpack.c.l.b16 %v814
        %v886 = vunpack.c.l.b16 %v815
        %v887 = vunpack.c.l.b16 %v816
        %v888 = vunpack.c.l.b16 %v817
        %v889 = vunpack.c.l.b16 %v818
        %v890 = vunpack.c.l.b16 %v819
        %v891 = vunpack.c.l.b16 %v820
        %v892 = vunpack.c.l.b16 %v821
        %v893 = vunpack.c.l.b16 %v822
        %v894 = vunpack.c.l.b16 %v823
        %v895 = vunpack.c.l.b16 %v824
        %v896 = vunpack.c.l.b16 %v825
        %v897 = vunpack.c.l.b16 %v826
        %v898 = vunpack.c.l.b16 %v827
        %v899 = vunpack.c.l.b16 %v828
        %v900 = vunpack.c.l.b16 %v829
        %v901 = vunpack.c.l.b16 %v830
        %v902 = vunpack.c.l.b16 %v831
        %v903 = vpack.c.b16 %v872, %v871
        %v904 = vpack.c.b16 %v874, %v873
        %v905 = vpack.c.b16 %v876, %v875
        %v906 = vpack.c.b16 %v878, %v877
        %v907 = vpack.c.b16 %v880, %v879
        %v908 = vpack.c.b16 %v882, %v881
        %v909 = vpack.c.b16 %v884, %v883
        %v910 = vpack.c.b16 %v886, %v885
        %v911 = vpack.c.b16 %v888, %v887
        %v912 = vpack.c.b16 %v890, %v889
        %v913 = vpack.c.b16 %v892, %v891
        %v914 = vpack.c.b16 %v894, %v893
        %v915 = vpack.c.b16 %v896, %v895
        %v916 = vpack.c.b16 %v898, %v897
        %v917 = vpack.c.b16 %v900, %v899
        %v918 = vpack.c.b16 %v902, %v901
        %935 = vmatprep.subr.bf16.mxu0 0
        %936 = vmatpush1.bf16.msra.mxu0 %v903
        %937 = vmatprep.subr.bf16.mxu0 0
        %938 = vmatpush1.bf16.msra.mxu0 %v904
        %939 = vmatprep.subr.bf16.mxu0 0
        %940 = vmatpush1.bf16.msra.mxu0 %v905
        %941 = vmatprep.subr.bf16.mxu0 0
        %942 = vmatpush1.bf16.msra.mxu0 %v906
        %943 = vmatprep.subr.bf16.mxu0 0
        %944 = vmatpush1.bf16.msra.mxu0 %v907
        %945 = vmatprep.subr.bf16.mxu0 0
        %946 = vmatpush1.bf16.msra.mxu0 %v908
        %947 = vmatprep.subr.bf16.mxu0 0
        %948 = vmatpush1.bf16.msra.mxu0 %v909
        %949 = vmatprep.subr.bf16.mxu0 0
        %950 = vmatpush1.bf16.msra.mxu0 %v910
        %951 = vmatprep.subr.bf16.mxu0 0
        %952 = vmatpush1.bf16.msra.mxu0 %v911
        %953 = vmatprep.subr.bf16.mxu0 0
        %954 = vmatpush1.bf16.msra.mxu0 %v912
        %955 = vmatprep.subr.bf16.mxu0 0
        %956 = vmatpush1.bf16.msra.mxu0 %v913
        %957 = vmatprep.subr.bf16.mxu0 0
        %958 = vmatpush1.bf16.msra.mxu0 %v914
        %959 = vmatprep.subr.bf16.mxu0 0
        %960 = vmatpush1.bf16.msra.mxu0 %v915
        %961 = vmatprep.subr.bf16.mxu0 0
        %962 = vmatpush1.bf16.msra.mxu0 %v916
        %963 = vmatprep.subr.bf16.mxu0 0
        %964 = vmatpush1.bf16.msra.mxu0 %v917
        %965 = vmatprep.subr.bf16.mxu0 0
        %966 = vmatpush1.bf16.msra.mxu0 %v918
        %967 = vmatprep.mubr.bf16.mxu0 %v769
        %968 = vmatmul.mubr.bf16.gmra.mrb[0].mxu0 %v768
        %v969 = vpop.f32.mrb[0].mxu0
        %v970 = vadd.f32 %v837, %v969
        %v971 = vpop.f32.mrb[0].mxu0
        %v972 = vpop.f32.mrb[0].mxu0
        %v973 = vadd.f32 %v837, %v972
        %v974 = vpop.f32.mrb[0].mxu0
        %975 = vmatprep.mubr.bf16.mxu0 %v771
        %976 = vmatmul.mubr.bf16.gmra.mrb[0].mxu0 %v770
        %v977 = vpop.f32.mrb[0].mxu0
        %v978 = vadd.f32 %v837, %v977
        %v979 = vpop.f32.mrb[0].mxu0
        %v980 = vpop.f32.mrb[0].mxu0
        %v981 = vadd.f32 %v837, %v980
        %v982 = vpop.f32.mrb[0].mxu0
        %983 = vmatprep.mubr.bf16.mxu0 %v773
        %984 = vmatmul.mubr.bf16.gmra.mrb[0].mxu0 %v772
        %v985 = vpop.f32.mrb[0].mxu0
        %v986 = vadd.f32 %v837, %v985
        %v987 = vpop.f32.mrb[0].mxu0
        %v988 = vpop.f32.mrb[0].mxu0
        %v989 = vadd.f32 %v837, %v988
        %v990 = vpop.f32.mrb[0].mxu0
        %991 = vmatprep.mubr.bf16.mxu0 %v775
        %992 = vmatmul.mubr.bf16.gmra.mrb[0].mxu0 %v774
        %v993 = vpop.f32.mrb[0].mxu0
        %v994 = vadd.f32 %v837, %v993
        %v995 = vpop.f32.mrb[0].mxu0
        %v996 = vpop.f32.mrb[0].mxu0
        %v997 = vadd.f32 %v837, %v996
        %v998 = vpop.f32.mrb[0].mxu0
        %999 = vmatprep.mubr.bf16.mxu0 %v777
        %1000 = vmatmul.mubr.bf16.gmra.mrb[0].mxu0 %v776
        %v1001 = vpop.f32.mrb[0].mxu0
        %v1002 = vadd.f32 %v837, %v1001
        %v1003 = vpop.f32.mrb[0].mxu0
        %v1004 = vpop.f32.mrb[0].mxu0
        %v1005 = vadd.f32 %v837, %v1004
        %v1006 = vpop.f32.mrb[0].mxu0
        %1007 = vmatprep.mubr.bf16.mxu0 %v779
        %1008 = vmatmul.mubr.bf16.gmra.mrb[0].mxu0 %v778
        %v1009 = vpop.f32.mrb[0].mxu0
        %v1010 = vadd.f32 %v837, %v1009
        %v1011 = vpop.f32.mrb[0].mxu0
        %v1012 = vpop.f32.mrb[0].mxu0
        %v1013 = vadd.f32 %v837, %v1012
        %v1014 = vpop.f32.mrb[0].mxu0
        %1015 = vmatprep.mubr.bf16.mxu0 %v781
        %1016 = vmatmul.mubr.bf16.gmra.mrb[0].mxu0 %v780
        %v1017 = vpop.f32.mrb[0].mxu0
        %v1018 = vadd.f32 %v837, %v1017
        %v1019 = vpop.f32.mrb[0].mxu0
        %v1020 = vpop.f32.mrb[0].mxu0
        %v1021 = vadd.f32 %v837, %v1020
        %v1022 = vpop.f32.mrb[0].mxu0
        %1023 = vmatprep.mubr.bf16.mxu0 %v783
        %1024 = vmatmul.mubr.bf16.gmra.mrb[0].mxu0 %v782
        %v1025 = vpop.f32.mrb[0].mxu0
        %v1026 = vadd.f32 %v837, %v1025
        %v1027 = vpop.f32.mrb[0].mxu0
        %v1028 = vpop.f32.mrb[0].mxu0
        %v1029 = vadd.f32 %v837, %v1028
        %v1030 = vpop.f32.mrb[0].mxu0
        %1031 = vmatprep.mubr.bf16.mxu0 %v785
        %1032 = vmatmul.mubr.bf16.gmra.mrb[0].mxu0 %v784
        %v1033 = vpop.f32.mrb[0].mxu0
        %v1034 = vadd.f32 %v837, %v1033
        %v1035 = vpop.f32.mrb[0].mxu0
        %v1036 = vpop.f32.mrb[0].mxu0
        %v1037 = vadd.f32 %v837, %v1036
        %v1038 = vpop.f32.mrb[0].mxu0
        %1039 = vmatprep.mubr.bf16.mxu0 %v787
        %1040 = vmatmul.mubr.bf16.gmra.mrb[0].mxu0 %v786
        %v1041 = vpop.f32.mrb[0].mxu0
        %v1042 = vadd.f32 %v837, %v1041
        %v1043 = vpop.f32.mrb[0].mxu0
        %v1044 = vpop.f32.mrb[0].mxu0
        %v1045 = vadd.f32 %v837, %v1044
        %v1046 = vpop.f32.mrb[0].mxu0
        %1047 = vmatprep.mubr.bf16.mxu0 %v789
        %1048 = vmatmul.mubr.bf16.gmra.mrb[0].mxu0 %v788
        %v1049 = vpop.f32.mrb[0].mxu0
        %v1050 = vadd.f32 %v837, %v1049
        %v1051 = vpop.f32.mrb[0].mxu0
        %v1052 = vpop.f32.mrb[0].mxu0
        %v1053 = vadd.f32 %v837, %v1052
        %v1054 = vpop.f32.mrb[0].mxu0
        %1055 = vmatprep.mubr.bf16.mxu0 %v791
        %1056 = vmatmul.mubr.bf16.gmra.mrb[0].mxu0 %v790
        %v1057 = vpop.f32.mrb[0].mxu0
        %v1058 = vadd.f32 %v837, %v1057
        %v1059 = vpop.f32.mrb[0].mxu0
        %v1060 = vpop.f32.mrb[0].mxu0
        %v1061 = vadd.f32 %v837, %v1060
        %v1062 = vpop.f32.mrb[0].mxu0
        %1063 = vmatprep.mubr.bf16.mxu0 %v793
        %1064 = vmatmul.mubr.bf16.gmra.mrb[0].mxu0 %v792
        %v1065 = vpop.f32.mrb[0].mxu0
        %v1066 = vadd.f32 %v837, %v1065
        %v1067 = vpop.f32.mrb[0].mxu0
        %v1068 = vpop.f32.mrb[0].mxu0
        %v1069 = vadd.f32 %v837, %v1068
        %v1070 = vpop.f32.mrb[0].mxu0
        %1071 = vmatprep.mubr.bf16.mxu0 %v795
        %1072 = vmatmul.mubr.bf16.gmra.mrb[0].mxu0 %v794
        %v1073 = vpop.f32.mrb[0].mxu0
        %v1074 = vadd.f32 %v837, %v1073
        %v1075 = vpop.f32.mrb[0].mxu0
        %v1076 = vpop.f32.mrb[0].mxu0
        %v1077 = vadd.f32 %v837, %v1076
        %v1078 = vpop.f32.mrb[0].mxu0
        %1079 = vmatprep.mubr.bf16.mxu0 %v797
        %1080 = vmatmul.mubr.bf16.gmra.mrb[0].mxu0 %v796
        %v1081 = vpop.f32.mrb[0].mxu0
        %v1082 = vadd.f32 %v837, %v1081
        %v1083 = vpop.f32.mrb[0].mxu0
        %v1084 = vpop.f32.mrb[0].mxu0
        %v1085 = vadd.f32 %v837, %v1084
        %v1086 = vpop.f32.mrb[0].mxu0
        %1087 = vmatprep.mubr.bf16.mxu0 %v799
        %1088 = vmatmul.mubr.bf16.gmra.mrb[0].mxu0 %v798
        %v1089 = vpop.f32.mrb[0].mxu0
        %v1090 = vadd.f32 %v837, %v1089
        %v1091 = vpop.f32.mrb[0].mxu0
        %v1092 = vpop.f32.mrb[0].mxu0
        %v1093 = vadd.f32 %v837, %v1092
        %v1094 = vpop.f32.mrb[0].mxu0
        %1095 = vdwg.mxu0
        %v1096 = vmax.f32 %v970, 0.0
        %v1097 = vmax.f32 %v973, 0.0
        %v1098 = vmax.f32 %v978, 0.0
        %v1099 = vmax.f32 %v981, 0.0
        %v1100 = vmax.f32 %v986, 0.0
        %v1101 = vmax.f32 %v989, 0.0
        %v1102 = vmax.f32 %v994, 0.0
        %v1103 = vmax.f32 %v997, 0.0
        %v1104 = vmax.f32 %v1002, 0.0
        %v1105 = vmax.f32 %v1005, 0.0
        %v1106 = vmax.f32 %v1010, 0.0
        %v1107 = vmax.f32 %v1013, 0.0
        %v1108 = vmax.f32 %v1018, 0.0
        %v1109 = vmax.f32 %v1021, 0.0
        %v1110 = vmax.f32 %v1026, 0.0
        %v1111 = vmax.f32 %v1029, 0.0
        %v1112 = vmax.f32 %v1034, 0.0
        %v1113 = vmax.f32 %v1037, 0.0
        %v1114 = vmax.f32 %v1042, 0.0
        %v1115 = vmax.f32 %v1045, 0.0
        %v1116 = vmax.f32 %v1050, 0.0
        %v1117 = vmax.f32 %v1053, 0.0
        %v1118 = vmax.f32 %v1058, 0.0
        %v1119 = vmax.f32 %v1061, 0.0
        %v1120 = vmax.f32 %v1066, 0.0
        %v1121 = vmax.f32 %v1069, 0.0
        %v1122 = vmax.f32 %v1074, 0.0
        %v1123 = vmax.f32 %v1077, 0.0
        %v1124 = vmax.f32 %v1082, 0.0
        %v1125 = vmax.f32 %v1085, 0.0
        %v1126 = vmax.f32 %v1090, 0.0
        %v1127 = vmax.f32 %v1093, 0.0
        %1128 = vst [vmem:[%s271] sm:$0xff] %v1096
        %1129 = vst [vmem:[%s271 + $0x8] sm:$0xff] %v1097
        %1130 = vst [vmem:[%s271 + $0x10] sm:$0xff] %v1098
        %1131 = vst [vmem:[%s271 + $0x18] sm:$0xff] %v1099
        %1132 = vst [vmem:[%s271 + $0x20] sm:$0xff] %v1100
        %1133 = vst [vmem:[%s271 + $0x28] sm:$0xff] %v1101
        %1134 = vst [vmem:[%s271 + $0x30] sm:$0xff] %v1102
        %1135 = vst [vmem:[%s271 + $0x38] sm:$0xff] %v1103
        %1136 = vst [vmem:[%s271 + $0x40] sm:$0xff] %v1104
        %1137 = vst [vmem:[%s271 + $0x48] sm:$0xff] %v1105
        %1138 = vst [vmem:[%s271 + $0x50] sm:$0xff] %v1106
        %1139 = vst [vmem:[%s271 + $0x58] sm:$0xff] %v1107
        %1140 = vst [vmem:[%s271 + $0x60] sm:$0xff] %v1108
        %1141 = vst [vmem:[%s271 + $0x68] sm:$0xff] %v1109
        %1142 = vst [vmem:[%s271 + $0x70] sm:$0xff] %v1110
        %1143 = vst [vmem:[%s271 + $0x78] sm:$0xff] %v1111
        %1144 = vst [vmem:[%s271 + $0x80] sm:$0xff] %v1112
        %1145 = vst [vmem:[%s271 + $0x88] sm:$0xff] %v1113
        %1146 = vst [vmem:[%s271 + $0x90] sm:$0xff] %v1114
        %1147 = vst [vmem:[%s271 + $0x98] sm:$0xff] %v1115
        %1148 = vst [vmem:[%s271 + $0xa0] sm:$0xff] %v1116
        %1149 = vst [vmem:[%s271 + $0xa8] sm:$0xff] %v1117
        %1150 = vst [vmem:[%s271 + $0xb0] sm:$0xff] %v1118
        %1151 = vst [vmem:[%s271 + $0xb8] sm:$0xff] %v1119
        %1152 = vst [vmem:[%s271 + $0xc0] sm:$0xff] %v1120
        %1153 = vst [vmem:[%s271 + $0xc8] sm:$0xff] %v1121
        %1154 = vst [vmem:[%s271 + $0xd0] sm:$0xff] %v1122
        %1155 = vst [vmem:[%s271 + $0xd8] sm:$0xff] %v1123
        %1156 = vst [vmem:[%s271 + $0xe0] sm:$0xff] %v1124
        %1157 = vst [vmem:[%s271 + $0xe8] sm:$0xff] %v1125
        %1158 = vst [vmem:[%s271 + $0xf0] sm:$0xff] %v1126
        %1159 = vst [vmem:[%s271 + $0xf8] sm:$0xff] %v1127
        %s1160 = sand.u32 %s141, 1
        %s1161 = scalar_lea.sflag [#allocation4], %s1160
        %s1162 = sand.u32 %s141, 1
        %s1163 = smul.addr %s1162, 256
        %s1164 = scalar_lea.vmem [#allocation8], %s1163
        // Predicated region
        $region53: #{tpu_custom_call.1} parent=39 // pred_check
          %p1165 = pneg %p151
        $region54: #{tpu_custom_call.1} parent=39 // pred_check_branch
          %1167 = sbr.rel (%p1165) target = $region56
        $region55: #{tpu_custom_call.1} parent=39 // pred_region
          %s1168 = smul.u32 32, %s23
          %s1170 = ssub.s32 4096, 4096
          %1171 = vsyncadd %s1161, %s1170
          %s1172 = smul.addr %s1168, 128
          %s1173 = scalar_lea.hbm %s5, %s1172
          %s1174 = sshll.u32 %s1164, 4
          %s1175 = int_to_ptr.vmem [resolvable:$true] %s1174
          %1180 = dma.vmem_to_hbm [thread:$0]  %s1175, 4096, %s1173, %s1161, 128, 128, 8
        $region56: #{tpu_custom_call.1} parent=39 // pred_fallthru
          _
      $region40: #{tpu_custom_call.1} parent=5 // pred_fallthru
        _
      %p1181 = scmp.le.s32.totalorder 2, %s18
      // Predicated region
      $region57: #{tpu_custom_call.1} parent=5 // pred_check
        %p1182 = pneg %p1181
      $region58: #{tpu_custom_call.1} parent=5 // pred_check_branch
        %1184 = sbr.rel (%p1182) target = $region60
      $region59: #{tpu_custom_call.1} parent=5 // pred_region
        %s1185 = ssub.s32 %s18, 2
        // Predicated region
        $region61: #{tpu_custom_call.1} parent=59 // pred_check
          %p1186 = pneg %p157
        $region62: #{tpu_custom_call.1} parent=59 // pred_check_branch
          %1188 = sbr.rel (%p1186) target = $region64
        $region63: #{tpu_custom_call.1} parent=59 // pred_region
          %s1189 = sand.u32 %s142, 1
          %s1190 = scalar_lea.sflag [#allocation4], %s1189
          %s1191 = sand.u32 %s142, 1
          %s1192 = smul.addr %s1191, 256
          %s1193 = scalar_lea.vmem [#allocation8], %s1192
          %1194 = dma.done %s1190, 4096
        $region64: #{tpu_custom_call.1} parent=59 // pred_fallthru
          _
      $region60: #{tpu_custom_call.1} parent=5 // pred_fallthru
        _
    $region6: #{tpu_custom_call.1} parent=1 // loop_footer
      %s22 = sadd.s32 1, %s18
    $region7: #{tpu_custom_call.1} parent=1 // loop_footer_branch
      %17 = sbr.rel target = $region3
    $region8: #{tpu_custom_call.1} parent=1 // loop_exit
      _
    %1195 = vsyncpa [#allocation3], 1
    %s1196 = scalar_lea.sflag [#allocation3], 1
    %1197 = vsyncpa %s1196, 1
    %1198 = vsyncpa [#allocation6], 1
    %1199 = vsyncpa [#allocation4], 1
    %s1200 = scalar_lea.sflag [#allocation4], 1
    %1201 = vsyncpa %s1200, 1

</llo_original>
